<compile_context>
chip_gen: v7x
topology: tpu7x:2x2x1
jax: 0.10.0
libtpu: 0.0.40
codegen_flags: <defaults>
</compile_context>

<pallas_src>
import functools

import jax
import jax.numpy as jnp
from jax.experimental import pallas as pl
from jax.experimental.pallas import tpu as pltpu


BN_EPS = 1e-5


def _conv_bn_relu_kernel(a_ref, w_ref, gb_ref, o_ref, *,
                         cout, inv_count, apply_relu):
    """Fused Conv2d + BatchNorm2d(batch stats) + ReLU, single invocation.

    a_ref:  [N*Ho, KH*Wp*Cin]   stacked / KH-folded im2row input
    w_ref:  [KH*Wp*Cin, Wo*Cout] Toeplitz-expanded weights (lane-dense RHS)
    gb_ref: [2, Cout]            row 0 = gamma, row 1 = beta
    o_ref:  [N*Ho, Wo*Cout]      lane-dense output slab (Wo*Cout = 128 here)
    """
    woc = o_ref.shape[-1]

    # ---- convolution: ONE lane-dense MXU matmul (M=N*Ho, K=KH*Wp*Cin) ----
    o_ref[...] = jnp.dot(a_ref[...], w_ref[...],
                         preferred_element_type=jnp.float32)

    # ---- BN batch statistics, single pass (E[x^2] - mean^2 form) ----
    y0 = o_ref[...]
    stats_l = jnp.concatenate(
        [jnp.sum(y0, axis=0, keepdims=True),
         jnp.sum(y0 * y0, axis=0, keepdims=True)],
        axis=0)                                               # [2, Wo*Cout]

    # lane<->channel one-hot selectors, built in-kernel (no extra DMAs)
    csel = (jax.lax.broadcasted_iota(jnp.int32, (woc, cout), 0) % cout
            == jax.lax.broadcasted_iota(jnp.int32, (woc, cout), 1)
            ).astype(jnp.float32)                             # [Wo*Cout, Cout]
    cselt = (jax.lax.broadcasted_iota(jnp.int32, (cout, woc), 1) % cout
             == jax.lax.broadcasted_iota(jnp.int32, (cout, woc), 0)
             ).astype(jnp.float32)                            # [Cout, Wo*Cout]

    # one matmul reduces both sums lane->channel
    stats_c = jnp.dot(stats_l, csel,
                      preferred_element_type=jnp.float32) * inv_count  # [2,Cout]
    mean = stats_c[0:1, :]
    var = stats_c[1:2, :] - mean * mean                       # biased variance

    gb = gb_ref[...]
    scale = gb[0:1, :] * jax.lax.rsqrt(var + BN_EPS)          # [1, Cout]
    shift = gb[1:2, :] - mean * scale                         # [1, Cout]

    # one matmul broadcasts both scale & shift channel->lane
    ss_l = jnp.dot(jnp.concatenate([scale, shift], axis=0), cselt,
                   preferred_element_type=jnp.float32)        # [2, Wo*Cout]

    # ---- normalize in place + ReLU (lane-dense store) ----
    y = o_ref[...] * ss_l[0:1, :] + ss_l[1:2, :]
    if apply_relu:
        y = jnp.maximum(y, 0.0)
    o_ref[...] = y.astype(o_ref.dtype)


def make_conv_params(weight, gamma, beta, h, w, padding):
    """Precompute the Toeplitz-expanded weight slab and packed BN params.

    Hoisted off the per-call path: call once per weight set (inference) or
    once per optimizer step (training).
      weight: [Cout, Cin, KH, KW] (PyTorch OIHW layout)
    Returns (w_big [KH*Wp*Cin, Wo*Cout], gb [2, Cout]).
    """
    cout, cin, kh, kw = weight.shape
    wp = w + 2 * padding
    wo = wp - (kw - 1)

    # W-dimension Toeplitz expansion folded with the KH taps:
    #   w_big[(kh, wp, ci), (wo, co)] = weight[co, ci, kh, kw] where wp == wo + kw
    wt = jnp.transpose(weight, (2, 3, 1, 0)).astype(jnp.float32)  # [KH,KW,Cin,Cout]
    tap = (jnp.arange(wp)[None, :, None]
           == (jnp.arange(kw)[:, None, None] + jnp.arange(wo)[None, None, :])
           ).astype(jnp.float32)                                  # [KW, Wp, Wo]
    w_big = jnp.einsum("hkic,kpo->hpioc", wt, tap).reshape(
        kh * wp * cin, wo * cout)

    gb = jnp.stack([gamma, beta], axis=0).astype(jnp.float32)     # [2, Cout]
    return w_big, gb


@functools.partial(jax.jit,
                   static_argnames=("padding", "kh", "kw", "cout", "relu"))
def conv_bn_relu(x_nchw, w_big, gb, *, padding, kh, kw, cout, relu=True):
    """Forward pass of the `conv` module.

    x_nchw: [N, Cin, H, W] f32.  w_big / gb from make_conv_params().
    Returns [N, Cout, Ho, Wo] f32.
    """
    n, cin, h, w = x_nchw.shape
    hp, wp = h + 2 * padding, w + 2 * padding
    ho, wo = hp - (kh - 1), wp - (kw - 1)
    woc = wo * cout   # lane-dense when a multiple of 128 (here exactly 128)

    # ---- layout glue: NCHW -> padded NHWC, KH-shifted windows folded into K.
    #      The input is read once; duplication is only KH x a ~2 KiB slab. ----
    x_nhwc = jnp.transpose(x_nchw, (0, 2, 3, 1)).astype(jnp.float32)
    x_pad = jnp.pad(
        x_nhwc, ((0, 0), (padding, padding), (padding, padding), (0, 0)))
    a = jnp.stack([x_pad[:, k:k + ho] for k in range(kh)], axis=2)
    a = a.reshape(n * ho, kh * wp * cin)                      # [N*Ho, KH*Wp*Cin]

    kernel = functools.partial(
        _conv_bn_relu_kernel,
        cout=cout, inv_count=1.0 / float(n * ho * wo), apply_relu=relu)

    vmem = pl.BlockSpec(memory_space=pltpu.MemorySpace.VMEM)
    y_slab = pl.pallas_call(
        kernel,
        out_shape=jax.ShapeDtypeStruct((n * ho, woc), jnp.float32),
        in_specs=[vmem, vmem, vmem],
        out_specs=vmem,
    )(a, w_big, gb)

    # ---- glue: lane-dense slab back to NCHW ----
    y = y_slab.reshape(n, ho, wo, cout)
    return jnp.transpose(y, (0, 3, 1, 2))


def same_padding(kernel_size, dilation):
    # Mirror the module's 'same' padding arithmetic.
    p = kernel_size + (kernel_size - 1) * (dilation - 1)
    return p // 2 + (p % 2 - 1)


def _reference(x, w, gamma, beta, pad, relu):
    """Pure-JAX reference (XLA conv + BN(batch stats) + ReLU)."""
    y = jax.lax.conv_general_dilated(
        x, w, window_strides=(1, 1), padding=[(pad, pad), (pad, pad)],
        dimension_numbers=("NCHW", "OIHW", "NCHW"))
    mean = jnp.mean(y, axis=(0, 2, 3), keepdims=True)
    var = jnp.mean((y - mean) ** 2, axis=(0, 2, 3), keepdims=True)
    y = (y - mean) * jax.lax.rsqrt(var + BN_EPS)
    y = y * gamma.reshape(1, -1, 1, 1) + beta.reshape(1, -1, 1, 1)
    if relu:
        y = jnp.maximum(y, 0.0)
    return y


if __name__ == "__main__":
    # Module hyperparameters (small, consistent with the forward):
    N, Cin, H, W = 2, 4, 16, 16
    Cout, K = 8, 3
    stride, dilation = 1, 1
    pad = same_padding(K, dilation)  # = 1 for k=3, d=1

    key = jax.random.PRNGKey(0)
    kx, kw = jax.random.split(key)

    x = jax.random.normal(kx, (N, Cin, H, W), dtype=jnp.float32)

    # kaiming_normal_ (fan_in mode, gain = sqrt(2))
    fan_in = Cin * K * K
    std = (2.0 / fan_in) ** 0.5
    weight = std * jax.random.normal(kw, (Cout, Cin, K, K), dtype=jnp.float32)

    # BatchNorm2d fresh parameters
    gamma = jnp.ones((Cout,), dtype=jnp.float32)
    beta = jnp.zeros((Cout,), dtype=jnp.float32)

    # Weight expansion + BN-param packing hoisted off the per-call path.
    w_big, gb = make_conv_params(weight, gamma, beta, H, W, pad)

    y = conv_bn_relu(x, w_big, gb, padding=pad, kh=K, kw=K, cout=Cout,
                     relu=True)
    jax.block_until_ready(y)
    assert y.shape == (N, Cout, H, W), y.shape

    # quick numerical sanity check against pure-JAX reference
    y_ref = _reference(x, weight, gamma, beta, pad, relu=True)
    max_err = float(jnp.max(jnp.abs(y - y_ref)))
    assert max_err < 2e-3, f"max abs err {max_err}"

    print("KERNEL_OK")
</pallas_src>

<mosaic_0001>
module attributes {stable_mosaic.version = 11 : i64} {
  func.func @_conv_bn_relu_kernel(%arg0: memref<32x216xf32, #tpu.memory_space<vmem>>, %arg1: memref<216x128xf32, #tpu.memory_space<vmem>>, %arg2: memref<2x8xf32, #tpu.memory_space<vmem>>, %arg3: memref<32x128xf32, #tpu.memory_space<vmem>>) attributes {dimension_semantics = [], scalar_prefetch = 0 : i64, scratch_operands = 0 : i64, tpu.core_type = #tpu.core_type<tc>} {
    %c0 = arith.constant 0 : index
    %c0_0 = arith.constant 0 : index
    %0 = vector.load %arg0[%c0, %c0_0] : memref<32x216xf32, #tpu.memory_space<vmem>>, vector<32x216xf32>
    %c0_1 = arith.constant 0 : index
    %c0_2 = arith.constant 0 : index
    %1 = vector.load %arg1[%c0_1, %c0_2] : memref<216x128xf32, #tpu.memory_space<vmem>>, vector<216x128xf32>
    %cst = arith.constant dense<0.000000e+00> : vector<32x128xf32>
    %2 = tpu.matmul %0, %1, %cst {dimension_numbers = #tpu.dot_dimension_numbers<[1], [0], [0], [1], [0, 0, 1, 1], [], []>} : vector<32x216xf32>, vector<216x128xf32>, vector<32x128xf32> -> vector<32x128xf32>
    %c0_3 = arith.constant 0 : index
    %c0_4 = arith.constant 0 : index
    %3 = vector.load %arg3[%c0_3, %c0_4] : memref<32x128xf32, #tpu.memory_space<vmem>>, vector<32x128xf32>
    tpu.vector_store %arg3[%c0_3, %c0_4], %2 {strides = array<i32>} : memref<32x128xf32, #tpu.memory_space<vmem>>, vector<32x128xf32>,
    %c0_5 = arith.constant 0 : index
    %c0_6 = arith.constant 0 : index
    %4 = vector.load %arg3[%c0_5, %c0_6] : memref<32x128xf32, #tpu.memory_space<vmem>>, vector<32x128xf32>
    %cst_7 = arith.constant dense<0.000000e+00> : vector<128xf32>
    %5 = vector.multi_reduction <add>, %4, %cst_7 [0] : vector<32x128xf32> to vector<128xf32>
    %6 = vector.shape_cast %5 : vector<128xf32> to vector<1x128xf32>
    %7 = arith.mulf %4, %4 : vector<32x128xf32>
    %cst_8 = arith.constant dense<0.000000e+00> : vector<128xf32>
    %8 = vector.multi_reduction <add>, %7, %cst_8 [0] : vector<32x128xf32> to vector<128xf32>
    %9 = vector.shape_cast %8 : vector<128xf32> to vector<1x128xf32>
    %10 = tpu.concatenate %6, %9 in 0 : vector<1x128xf32>, vector<1x128xf32> -> vector<2x128xf32>
    %11 = tpu.iota {dimensions = array<i32: 0>} : vector<128x8xi32>
    %c8_i32 = arith.constant 8 : i32
    %c0_i32 = arith.constant 0 : i32
    %12 = arith.cmpi eq, %c8_i32, %c0_i32 : i32
    %c1_i32 = arith.constant 1 : i32
    %13 = arith.select %12, %c1_i32, %c8_i32 : i32
    %14 = vector.broadcast %13 : i32 to vector<128x8xi32>
    %15 = arith.remsi %11, %14 : vector<128x8xi32>
    %c0_i32_9 = arith.constant 0 : i32
    %16 = vector.broadcast %c0_i32_9 : i32 to vector<128x8xi32>
    %17 = arith.cmpi ne, %15, %16 : vector<128x8xi32>
    %c0_i32_10 = arith.constant 0 : i32
    %18 = vector.broadcast %c0_i32_10 : i32 to vector<128x8xi32>
    %19 = arith.cmpi slt, %15, %18 : vector<128x8xi32>
    %c0_i32_11 = arith.constant 0 : i32
    %20 = arith.cmpi slt, %13, %c0_i32_11 : i32
    %21 = vector.broadcast %20 : i1 to vector<128x8xi1>
    %22 = vector.broadcast %21 : vector<128x8xi1> to vector<128x8xi1>
    %23 = arith.xori %19, %22 : vector<128x8xi1>
    %24 = arith.andi %23, %17 : vector<128x8xi1>
    %25 = vector.broadcast %13 : i32 to vector<128x8xi32>
    %26 = arith.addi %15, %25 : vector<128x8xi32>
    %27 = arith.select %24, %26, %15 : vector<128x8xi1>, vector<128x8xi32>
    %28 = tpu.iota {dimensions = array<i32: 1>} : vector<128x8xi32>
    %29 = arith.cmpi eq, %27, %28 : vector<128x8xi32>
    %30 = arith.extui %29 : vector<128x8xi1> to vector<128x8xi32>
    %31 = arith.sitofp %30 : vector<128x8xi32> to vector<128x8xf32>
    %32 = tpu.iota {dimensions = array<i32: 1>} : vector<8x128xi32>
    %c8_i32_12 = arith.constant 8 : i32
    %c0_i32_13 = arith.constant 0 : i32
    %33 = arith.cmpi eq, %c8_i32_12, %c0_i32_13 : i32
    %c1_i32_14 = arith.constant 1 : i32
    %34 = arith.select %33, %c1_i32_14, %c8_i32_12 : i32
    %35 = vector.broadcast %34 : i32 to vector<8x128xi32>
    %36 = arith.remsi %32, %35 : vector<8x128xi32>
    %c0_i32_15 = arith.constant 0 : i32
    %37 = vector.broadcast %c0_i32_15 : i32 to vector<8x128xi32>
    %38 = arith.cmpi ne, %36, %37 : vector<8x128xi32>
    %c0_i32_16 = arith.constant 0 : i32
    %39 = vector.broadcast %c0_i32_16 : i32 to vector<8x128xi32>
    %40 = arith.cmpi slt, %36, %39 : vector<8x128xi32>
    %c0_i32_17 = arith.constant 0 : i32
    %41 = arith.cmpi slt, %34, %c0_i32_17 : i32
    %42 = vector.broadcast %41 : i1 to vector<8x128xi1>
    %43 = vector.broadcast %42 : vector<8x128xi1> to vector<8x128xi1>
    %44 = arith.xori %40, %43 : vector<8x128xi1>
    %45 = arith.andi %44, %38 : vector<8x128xi1>
    %46 = vector.broadcast %34 : i32 to vector<8x128xi32>
    %47 = arith.addi %36, %46 : vector<8x128xi32>
    %48 = arith.select %45, %47, %36 : vector<8x128xi1>, vector<8x128xi32>
    %49 = tpu.iota {dimensions = array<i32: 0>} : vector<8x128xi32>
    %50 = arith.cmpi eq, %48, %49 : vector<8x128xi32>
    %51 = arith.extui %50 : vector<8x128xi1> to vector<8x128xi32>
    %52 = arith.sitofp %51 : vector<8x128xi32> to vector<8x128xf32>
    %cst_18 = arith.constant dense<0.000000e+00> : vector<2x8xf32>
    %53 = tpu.matmul %10, %31, %cst_18 {dimension_numbers = #tpu.dot_dimension_numbers<[1], [0], [0], [1], [0, 0, 1, 1], [], []>} : vector<2x128xf32>, vector<128x8xf32>, vector<2x8xf32> -> vector<2x8xf32>
    %cst_19 = arith.constant 0.001953125 : f32
    %54 = vector.broadcast %cst_19 : f32 to vector<2x8xf32>
    %55 = arith.mulf %53, %54 : vector<2x8xf32>
    %56 = vector.extract_strided_slice %55 {offsets = [0, 0], sizes = [1, 8], strides = [1, 1]} : vector<2x8xf32> to vector<1x8xf32>
    %57 = vector.extract_strided_slice %55 {offsets = [1, 0], sizes = [1, 8], strides = [1, 1]} : vector<2x8xf32> to vector<1x8xf32>
    %58 = arith.mulf %56, %56 : vector<1x8xf32>
    %59 = arith.subf %57, %58 : vector<1x8xf32>
    %c0_20 = arith.constant 0 : index
    %c0_21 = arith.constant 0 : index
    %60 = vector.load %arg2[%c0_20, %c0_21] : memref<2x8xf32, #tpu.memory_space<vmem>>, vector<2x8xf32>
    %61 = vector.extract_strided_slice %60 {offsets = [0, 0], sizes = [1, 8], strides = [1, 1]} : vector<2x8xf32> to vector<1x8xf32>
    %cst_22 = arith.constant 9.99999974E-6 : f32
    %62 = vector.broadcast %cst_22 : f32 to vector<1x8xf32>
    %63 = arith.addf %59, %62 : vector<1x8xf32>
    %64 = math.rsqrt %63 : vector<1x8xf32>
    %65 = arith.mulf %61, %64 : vector<1x8xf32>
    %66 = vector.extract_strided_slice %60 {offsets = [1, 0], sizes = [1, 8], strides = [1, 1]} : vector<2x8xf32> to vector<1x8xf32>
    %67 = arith.mulf %56, %65 : vector<1x8xf32>
    %68 = arith.subf %66, %67 : vector<1x8xf32>
    %69 = tpu.concatenate %65, %68 in 0 : vector<1x8xf32>, vector<1x8xf32> -> vector<2x8xf32>
    %cst_23 = arith.constant dense<0.000000e+00> : vector<2x128xf32>
    %70 = tpu.matmul %69, %52, %cst_23 {dimension_numbers = #tpu.dot_dimension_numbers<[1], [0], [0], [1], [0, 0, 1, 1], [], []>} : vector<2x8xf32>, vector<8x128xf32>, vector<2x128xf32> -> vector<2x128xf32>
    %c0_24 = arith.constant 0 : index
    %c0_25 = arith.constant 0 : index
    %71 = vector.load %arg3[%c0_24, %c0_25] : memref<32x128xf32, #tpu.memory_space<vmem>>, vector<32x128xf32>
    %72 = vector.extract_strided_slice %70 {offsets = [0, 0], sizes = [1, 128], strides = [1, 1]} : vector<2x128xf32> to vector<1x128xf32>
    %73 = vector.broadcast %72 : vector<1x128xf32> to vector<32x128xf32>
    %74 = arith.mulf %71, %73 : vector<32x128xf32>
    %75 = vector.extract_strided_slice %70 {offsets = [1, 0], sizes = [1, 128], strides = [1, 1]} : vector<2x128xf32> to vector<1x128xf32>
    %76 = vector.broadcast %75 : vector<1x128xf32> to vector<32x128xf32>
    %77 = arith.addf %74, %76 : vector<32x128xf32>
    %cst_26 = arith.constant 0.000000e+00 : f32
    %78 = vector.broadcast %cst_26 : f32 to vector<32x128xf32>
    %79 = arith.maximumf %77, %78 : vector<32x128xf32>
    %c0_27 = arith.constant 0 : index
    %c0_28 = arith.constant 0 : index
    %80 = vector.load %arg3[%c0_27, %c0_28] : memref<32x128xf32, #tpu.memory_space<vmem>>, vector<32x128xf32>
    tpu.vector_store %arg3[%c0_27, %c0_28], %79 {strides = array<i32>} : memref<32x128xf32, #tpu.memory_space<vmem>>, vector<32x128xf32>,
    return
  }
}

</mosaic_0001>

<llo_original>
// kernel: conv_bn_relu.1
$region0: #{conv_bn_relu.1}
  #allocation0 [shape = 'u32[]', space=smem, size = 0x4, offset = 0x4, fixed_abs, tag = 'smem constant byte address 0x4 - core index']
  #allocation1 [shape = 'u32[144,128]{1,0:T(1,128)}', space=vmem, size = 0x12000, scoped, tag = 'internal scratch']
  %s0 = inlined_call_operand.vmem [shape: f32[32,216], index: 0, kind: input, shape index: {}]
  %s1 = inlined_call_operand.vmem [shape: f32[216,128], index: 1, kind: input, shape index: {}]
  %s2 = inlined_call_operand.vmem [shape: f32[2,8], index: 2, kind: input, shape index: {}]
  %s3 = inlined_call_operand.vmem [shape: f32[32,128], index: 3, kind: output, shape index: {}]
  %s4 = sld [smem:[#allocation0]]
  $region22: #{conv_bn_relu.1} parent=0
    _
  %s6 = ssub.s32 1, %s4
  %s7 = scalar_select 0, %s6, %s4
  // Predicated region
  $region2: #{conv_bn_relu.1} parent=0 // pred_check
    _
  $region3: #{conv_bn_relu.1} parent=0 // pred_check_branch
    %9 = sbr.rel (0) target = $region5
  $region4: #{conv_bn_relu.1} parent=0 // pred_region
    _
  $region5: #{conv_bn_relu.1} parent=0 // pred_fallthru
    _
  // Predicated region
  $region6: #{conv_bn_relu.1} parent=0 // pred_check
    _
  $region7: #{conv_bn_relu.1} parent=0 // pred_check_branch
    %11 = sbr.rel (0) target = $region9
  $region8: #{conv_bn_relu.1} parent=0 // pred_region
    _
  $region9: #{conv_bn_relu.1} parent=0 // pred_fallthru
    _
  // Predicated region
  $region10: #{conv_bn_relu.1} parent=0 // pred_check
    _
  $region11: #{conv_bn_relu.1} parent=0 // pred_check_branch
    %13 = sbr.rel (0) target = $region13
  $region12: #{conv_bn_relu.1} parent=0 // pred_region
    _
  $region13: #{conv_bn_relu.1} parent=0 // pred_fallthru
    _
  %v14 = vld [vmem:[%s0] sm:$0xff]
  %v15 = vld [vmem:[%s0 + $0x8] sm:$0xff]
  %v16 = vld [vmem:[%s0 + $0x10] sm:$0xff]
  %v17 = vld [vmem:[%s0 + $0x18] sm:$0xff]
  %v18 = vld [vmem:[%s0 + $0x20] sm:$0xff]
  %v19 = vld [vmem:[%s0 + $0x28] sm:$0xff]
  %v20 = vld [vmem:[%s0 + $0x30] sm:$0xff]
  %v21 = vld [vmem:[%s0 + $0x38] sm:$0xff]
  %v22 = vld [vmem:[%s1] sm:$0xff]
  %v23 = vld [vmem:[%s1 + $0x8] sm:$0xff]
  %v24 = vld [vmem:[%s1 + $0x10] sm:$0xff]
  %v25 = vld [vmem:[%s1 + $0x18] sm:$0xff]
  %v26 = vld [vmem:[%s1 + $0x20] sm:$0xff]
  %v27 = vld [vmem:[%s1 + $0x28] sm:$0xff]
  %v28 = vld [vmem:[%s1 + $0x30] sm:$0xff]
  %v29 = vld [vmem:[%s1 + $0x38] sm:$0xff]
  %v30 = vld [vmem:[%s1 + $0x40] sm:$0xff]
  %v31 = vld [vmem:[%s1 + $0x48] sm:$0xff]
  %v32 = vld [vmem:[%s1 + $0x50] sm:$0xff]
  %v33 = vld [vmem:[%s1 + $0x58] sm:$0xff]
  %v34 = vld [vmem:[%s1 + $0x60] sm:$0xff]
  %v35 = vld [vmem:[%s1 + $0x68] sm:$0xff]
  %v36 = vld [vmem:[%s1 + $0x70] sm:$0xff]
  %v37 = vld [vmem:[%s1 + $0x78] sm:$0xff]
  %v38 = vld [vmem:[%s1 + $0x80] sm:$0xff]
  %v39 = vld [vmem:[%s1 + $0x88] sm:$0xff]
  %v40 = vld [vmem:[%s1 + $0x90] sm:$0xff]
  %v41 = vld [vmem:[%s1 + $0x98] sm:$0xff]
  %v42 = vld [vmem:[%s1 + $0xa0] sm:$0xff]
  %v43 = vld [vmem:[%s1 + $0xa8] sm:$0xff]
  %v44 = vld [vmem:[%s1 + $0xb0] sm:$0xff]
  %v45 = vld [vmem:[%s1 + $0xb8] sm:$0xff]
  %v46 = vld [vmem:[%s1 + $0xc0] sm:$0xff]
  %v47 = vld [vmem:[%s1 + $0xc8] sm:$0xff]
  %v48 = vld [vmem:[%s1 + $0xd0] sm:$0xff]
  %vm49 = vcmask 719872
  %v51 = vsel %vm49, %v15, 0
  %v54 = vsel %vm49, %v17, 0
  %v57 = vsel %vm49, %v19, 0
  %v60 = vsel %vm49, %v21, 0
  %62 = vmatprep.subr.mxu0 0.0
  %63 = vmatpush1.msra.mxu0 %v22
  %64 = vmatprep.subr.mxu0 0.0
  %65 = vmatpush1.msra.mxu0 %v23
  %66 = vmatprep.subr.mxu0 0.0
  %67 = vmatpush1.msra.mxu0 %v24
  %68 = vmatprep.subr.mxu0 0.0
  %69 = vmatpush1.msra.mxu0 %v25
  %70 = vmatprep.subr.mxu0 0.0
  %71 = vmatpush1.msra.mxu0 %v26
  %72 = vmatprep.subr.mxu0 0.0
  %73 = vmatpush1.msra.mxu0 %v27
  %74 = vmatprep.subr.mxu0 0.0
  %75 = vmatpush1.msra.mxu0 %v28
  %76 = vmatprep.subr.mxu0 0.0
  %77 = vmatpush1.msra.mxu0 %v29
  %78 = vmatprep.subr.mxu0 0.0
  %79 = vmatpush1.msra.mxu0 %v30
  %80 = vmatprep.subr.mxu0 0.0
  %81 = vmatpush1.msra.mxu0 %v31
  %82 = vmatprep.subr.mxu0 0.0
  %83 = vmatpush1.msra.mxu0 %v32
  %84 = vmatprep.subr.mxu0 0.0
  %85 = vmatpush1.msra.mxu0 %v33
  %86 = vmatprep.subr.mxu0 0.0
  %87 = vmatpush1.msra.mxu0 %v34
  %88 = vmatprep.subr.mxu0 0.0
  %89 = vmatpush1.msra.mxu0 %v35
  %90 = vmatprep.subr.mxu0 0.0
  %91 = vmatpush1.msra.mxu0 %v36
  %92 = vmatprep.subr.mxu0 0.0
  %93 = vmatpush1.msra.mxu0 %v37
  %94 = vmatprep.subr.mxu0 0.0
  %95 = vmatpush1.msra.mxu0 %v38
  %96 = vmatprep.subr.mxu0 0.0
  %97 = vmatpush1.msra.mxu0 %v39
  %98 = vmatprep.subr.mxu0 0.0
  %99 = vmatpush1.msra.mxu0 %v40
  %100 = vmatprep.subr.mxu0 0.0
  %101 = vmatpush1.msra.mxu0 %v41
  %102 = vmatprep.subr.mxu0 0.0
  %103 = vmatpush1.msra.mxu0 %v42
  %104 = vmatprep.subr.mxu0 0.0
  %105 = vmatpush1.msra.mxu0 %v43
  %106 = vmatprep.subr.mxu0 0.0
  %107 = vmatpush1.msra.mxu0 %v44
  %108 = vmatprep.subr.mxu0 0.0
  %109 = vmatpush1.msra.mxu0 %v45
  %110 = vmatprep.subr.mxu0 0.0
  %111 = vmatpush1.msra.mxu0 %v46
  %112 = vmatprep.subr.mxu0 0.0
  %113 = vmatpush1.msra.mxu0 %v47
  %114 = vmatprep.subr.mxu0 0.0
  %115 = vmatpush1.msra.mxu0 %v48
  %116 = vmatprep.subr.mxu0 0.0
  %117 = vmatpush1.msra.mxu0 0.0
  %118 = vmatprep.subr.mxu0 0.0
  %119 = vmatpush1.msra.mxu0 0.0
  %120 = vmatprep.subr.mxu0 0.0
  %121 = vmatpush1.msra.mxu0 0.0
  %122 = vmatprep.subr.mxu0 0.0
  %123 = vmatpush1.msra.mxu0 0.0
  %124 = vmatprep.subr.mxu0 0.0
  %125 = vmatpush1.msra.mxu0 0.0
  %126 = vmatprep.mubr.f32.mxu0 %v51
  %127 = vmatmul.mubr.f32.gmra.mrb[0].mxu0 %v14
  %v128 = vpop.f32.mrb[0].mxu0
  %v129 = vadd.f32 0.0, %v128
  %v130 = vpop.f32.mrb[0].mxu0
  %131 = vmatprep.mubr.f32.mxu0 %v54
  %132 = vmatmul.mubr.f32.gmra.mrb[0].mxu0 %v16
  %v133 = vpop.f32.mrb[0].mxu0
  %v134 = vadd.f32 0.0, %v133
  %v135 = vpop.f32.mrb[0].mxu0
  %136 = vmatprep.mubr.f32.mxu0 %v57
  %137 = vmatmul.mubr.f32.gmra.mrb[0].mxu0 %v18
  %v138 = vpop.f32.mrb[0].mxu0
  %v139 = vadd.f32 0.0, %v138
  %v140 = vpop.f32.mrb[0].mxu0
  %141 = vmatprep.mubr.f32.mxu0 %v60
  %142 = vmatmul.mubr.f32.gmra.mrb[0].mxu0 %v20
  %v143 = vpop.f32.mrb[0].mxu0
  %v144 = vadd.f32 0.0, %v143
  %v145 = vpop.f32.mrb[0].mxu0
  %146 = vdwg.mxu0
  %147 = vst [vmem:[%s3] sm:$0xff] %v129
  %148 = vst [vmem:[%s3 + $0x8] sm:$0xff] %v134
  %149 = vst [vmem:[%s3 + $0x10] sm:$0xff] %v139
  %150 = vst [vmem:[%s3 + $0x18] sm:$0xff] %v144
  %v151 = vld [vmem:[%s3] sm:$0xff]
  %v152 = vld [vmem:[%s3 + $0x8] sm:$0xff]
  %v153 = vld [vmem:[%s3 + $0x10] sm:$0xff]
  %v154 = vld [vmem:[%s3 + $0x18] sm:$0xff]
  %v155 = vadd.f32 %v151, %v152
  %v156 = vadd.f32 %v155, %v153
  %v157 = vadd.f32 %v156, %v154
  %v158 = vrot.slane %v157, 4
  %v159 = vadd.f32 %v157, %v158
  %v160 = vrot.slane %v159, 2
  %v161 = vadd.f32 %v159, %v160
  %v162 = vrot.slane %v161, 1
  %v163 = vadd.f32 %v161, %v162
  %v164 = vmul.f32 %v151, %v151
  %v165 = vmul.f32 %v152, %v152
  %v166 = vmul.f32 %v153, %v153
  %v167 = vmul.f32 %v154, %v154
  %v168 = vadd.f32 %v164, %v165
  %v169 = vadd.f32 %v168, %v166
  %v170 = vadd.f32 %v169, %v167
  %v171 = vrot.slane %v170, 4
  %v172 = vadd.f32 %v170, %v171
  %v173 = vrot.slane %v172, 2
  %v174 = vadd.f32 %v172, %v173
  %v175 = vrot.slane %v174, 1
  %v176 = vadd.f32 %v174, %v175
  %vm177 = vcmask 1040384
  %v178 = vsel %vm177, %v163, %v176
  %v179 = vlaneseq
  %v180 = vshrl.u32 %v179, 7
  %v181 = vadd.s32 %v180, 8
  %v182 = vadd.s32 %v180, 16
  %v183 = vadd.s32 %v180, 24
  %v184 = vadd.s32 %v180, 32
  %v185 = vadd.s32 %v180, 40
  %v186 = vadd.s32 %v180, 48
  %v187 = vadd.s32 %v180, 56
  %v188 = vadd.s32 %v180, 64
  %v189 = vadd.s32 %v180, 72
  %v190 = vadd.s32 %v180, 80
  %v191 = vadd.s32 %v180, 88
  %v192 = vadd.s32 %v180, 96
  %v193 = vadd.s32 %v180, 104
  %v194 = vadd.s32 %v180, 112
  %v195 = vadd.s32 %v180, 120
  %vm196 = vcmp.lt.s32.totalorder %v180, 0
  %v197 = vsub.s32 0, %v180
  %v198 = vsel %vm196, %v197, %v180
  %v199 = vshrl.u32 %v198, 3
  %v200 = vand.u32 %v198, 7
  %v201 = vsub.s32 0, %v200
  %v202 = vsel %vm196, %v201, %v200
  %vm203 = vcmp.lt.s32.totalorder %v181, 0
  %v204 = vsub.s32 0, %v181
  %v205 = vsel %vm203, %v204, %v181
  %v206 = vshrl.u32 %v205, 3
  %v207 = vand.u32 %v205, 7
  %v208 = vsub.s32 0, %v207
  %v209 = vsel %vm203, %v208, %v207
  %vm210 = vcmp.lt.s32.totalorder %v182, 0
  %v211 = vsub.s32 0, %v182
  %v212 = vsel %vm210, %v211, %v182
  %v213 = vshrl.u32 %v212, 3
  %v214 = vand.u32 %v212, 7
  %v215 = vsub.s32 0, %v214
  %v216 = vsel %vm210, %v215, %v214
  %vm217 = vcmp.lt.s32.totalorder %v183, 0
  %v218 = vsub.s32 0, %v183
  %v219 = vsel %vm217, %v218, %v183
  %v220 = vshrl.u32 %v219, 3
  %v221 = vand.u32 %v219, 7
  %v222 = vsub.s32 0, %v221
  %v223 = vsel %vm217, %v222, %v221
  %vm224 = vcmp.lt.s32.totalorder %v184, 0
  %v225 = vsub.s32 0, %v184
  %v226 = vsel %vm224, %v225, %v184
  %v227 = vshrl.u32 %v226, 3
  %v228 = vand.u32 %v226, 7
  %v229 = vsub.s32 0, %v228
  %v230 = vsel %vm224, %v229, %v228
  %vm231 = vcmp.lt.s32.totalorder %v185, 0
  %v232 = vsub.s32 0, %v185
  %v233 = vsel %vm231, %v232, %v185
  %v234 = vshrl.u32 %v233, 3
  %v235 = vand.u32 %v233, 7
  %v236 = vsub.s32 0, %v235
  %v237 = vsel %vm231, %v236, %v235
  %vm238 = vcmp.lt.s32.totalorder %v186, 0
  %v239 = vsub.s32 0, %v186
  %v240 = vsel %vm238, %v239, %v186
  %v241 = vshrl.u32 %v240, 3
  %v242 = vand.u32 %v240, 7
  %v243 = vsub.s32 0, %v242
  %v244 = vsel %vm238, %v243, %v242
  %vm245 = vcmp.lt.s32.totalorder %v187, 0
  %v246 = vsub.s32 0, %v187
  %v247 = vsel %vm245, %v246, %v187
  %v248 = vshrl.u32 %v247, 3
  %v249 = vand.u32 %v247, 7
  %v250 = vsub.s32 0, %v249
  %v251 = vsel %vm245, %v250, %v249
  %vm252 = vcmp.lt.s32.totalorder %v188, 0
  %v253 = vsub.s32 0, %v188
  %v254 = vsel %vm252, %v253, %v188
  %v255 = vshrl.u32 %v254, 3
  %v256 = vand.u32 %v254, 7
  %v257 = vsub.s32 0, %v256
  %v258 = vsel %vm252, %v257, %v256
  %vm259 = vcmp.lt.s32.totalorder %v189, 0
  %v260 = vsub.s32 0, %v189
  %v261 = vsel %vm259, %v260, %v189
  %v262 = vshrl.u32 %v261, 3
  %v263 = vand.u32 %v261, 7
  %v264 = vsub.s32 0, %v263
  %v265 = vsel %vm259, %v264, %v263
  %vm266 = vcmp.lt.s32.totalorder %v190, 0
  %v267 = vsub.s32 0, %v190
  %v268 = vsel %vm266, %v267, %v190
  %v269 = vshrl.u32 %v268, 3
  %v270 = vand.u32 %v268, 7
  %v271 = vsub.s32 0, %v270
  %v272 = vsel %vm266, %v271, %v270
  %vm273 = vcmp.lt.s32.totalorder %v191, 0
  %v274 = vsub.s32 0, %v191
  %v275 = vsel %vm273, %v274, %v191
  %v276 = vshrl.u32 %v275, 3
  %v277 = vand.u32 %v275, 7
  %v278 = vsub.s32 0, %v277
  %v279 = vsel %vm273, %v278, %v277
  %vm280 = vcmp.lt.s32.totalorder %v192, 0
  %v281 = vsub.s32 0, %v192
  %v282 = vsel %vm280, %v281, %v192
  %v283 = vshrl.u32 %v282, 3
  %v284 = vand.u32 %v282, 7
  %v285 = vsub.s32 0, %v284
  %v286 = vsel %vm280, %v285, %v284
  %vm287 = vcmp.lt.s32.totalorder %v193, 0
  %v288 = vsub.s32 0, %v193
  %v289 = vsel %vm287, %v288, %v193
  %v290 = vshrl.u32 %v289, 3
  %v291 = vand.u32 %v289, 7
  %v292 = vsub.s32 0, %v291
  %v293 = vsel %vm287, %v292, %v291
  %vm294 = vcmp.lt.s32.totalorder %v194, 0
  %v295 = vsub.s32 0, %v194
  %v296 = vsel %vm294, %v295, %v194
  %v297 = vshrl.u32 %v296, 3
  %v298 = vand.u32 %v296, 7
  %v299 = vsub.s32 0, %v298
  %v300 = vsel %vm294, %v299, %v298
  %vm301 = vcmp.lt.s32.totalorder %v195, 0
  %v302 = vsub.s32 0, %v195
  %v303 = vsel %vm301, %v302, %v195
  %v304 = vshrl.u32 %v303, 3
  %v305 = vand.u32 %v303, 7
  %v306 = vsub.s32 0, %v305
  %v307 = vsel %vm301, %v306, %v305
  %vm308 = vcmp.ne.s32.totalorder %v202, 0
  %vm309 = vcmp.ne.s32.totalorder %v209, 0
  %vm310 = vcmp.ne.s32.totalorder %v216, 0
  %vm311 = vcmp.ne.s32.totalorder %v223, 0
  %vm312 = vcmp.ne.s32.totalorder %v230, 0
  %vm313 = vcmp.ne.s32.totalorder %v237, 0
  %vm314 = vcmp.ne.s32.totalorder %v244, 0
  %vm315 = vcmp.ne.s32.totalorder %v251, 0
  %vm316 = vcmp.ne.s32.totalorder %v258, 0
  %vm317 = vcmp.ne.s32.totalorder %v265, 0
  %vm318 = vcmp.ne.s32.totalorder %v272, 0
  %vm319 = vcmp.ne.s32.totalorder %v279, 0
  %vm320 = vcmp.ne.s32.totalorder %v286, 0
  %vm321 = vcmp.ne.s32.totalorder %v293, 0
  %vm322 = vcmp.ne.s32.totalorder %v300, 0
  %vm323 = vcmp.ne.s32.totalorder %v307, 0
  %vm324 = vcmp.lt.s32.totalorder %v202, 0
  %vm325 = vcmp.lt.s32.totalorder %v209, 0
  %vm326 = vcmp.lt.s32.totalorder %v216, 0
  %vm327 = vcmp.lt.s32.totalorder %v223, 0
  %vm328 = vcmp.lt.s32.totalorder %v230, 0
  %vm329 = vcmp.lt.s32.totalorder %v237, 0
  %vm330 = vcmp.lt.s32.totalorder %v244, 0
  %vm331 = vcmp.lt.s32.totalorder %v251, 0
  %vm332 = vcmp.lt.s32.totalorder %v258, 0
  %vm333 = vcmp.lt.s32.totalorder %v265, 0
  %vm334 = vcmp.lt.s32.totalorder %v272, 0
  %vm335 = vcmp.lt.s32.totalorder %v279, 0
  %vm336 = vcmp.lt.s32.totalorder %v286, 0
  %vm337 = vcmp.lt.s32.totalorder %v293, 0
  %vm338 = vcmp.lt.s32.totalorder %v300, 0
  %vm339 = vcmp.lt.s32.totalorder %v307, 0
  %vm340 = vmand %vm324, %vm308
  %vm341 = vmand %vm325, %vm309
  %vm342 = vmand %vm326, %vm310
  %vm343 = vmand %vm327, %vm311
  %vm344 = vmand %vm328, %vm312
  %vm345 = vmand %vm329, %vm313
  %vm346 = vmand %vm330, %vm314
  %vm347 = vmand %vm331, %vm315
  %vm348 = vmand %vm332, %vm316
  %vm349 = vmand %vm333, %vm317
  %vm350 = vmand %vm334, %vm318
  %vm351 = vmand %vm335, %vm319
  %vm352 = vmand %vm336, %vm320
  %vm353 = vmand %vm337, %vm321
  %vm354 = vmand %vm338, %vm322
  %vm355 = vmand %vm339, %vm323
  %v356 = vadd.s32 %v202, 8
  %v357 = vadd.s32 %v209, 8
  %v358 = vadd.s32 %v216, 8
  %v359 = vadd.s32 %v223, 8
  %v360 = vadd.s32 %v230, 8
  %v361 = vadd.s32 %v237, 8
  %v362 = vadd.s32 %v244, 8
  %v363 = vadd.s32 %v251, 8
  %v364 = vadd.s32 %v258, 8
  %v365 = vadd.s32 %v265, 8
  %v366 = vadd.s32 %v272, 8
  %v367 = vadd.s32 %v279, 8
  %v368 = vadd.s32 %v286, 8
  %v369 = vadd.s32 %v293, 8
  %v370 = vadd.s32 %v300, 8
  %v371 = vadd.s32 %v307, 8
  %v372 = vsel %vm340, %v356, %v202
  %v373 = vsel %vm341, %v357, %v209
  %v374 = vsel %vm342, %v358, %v216
  %v375 = vsel %vm343, %v359, %v223
  %v376 = vsel %vm344, %v360, %v230
  %v377 = vsel %vm345, %v361, %v237
  %v378 = vsel %vm346, %v362, %v244
  %v379 = vsel %vm347, %v363, %v251
  %v380 = vsel %vm348, %v364, %v258
  %v381 = vsel %vm349, %v365, %v265
  %v382 = vsel %vm350, %v366, %v272
  %v383 = vsel %vm351, %v367, %v279
  %v384 = vsel %vm352, %v368, %v286
  %v385 = vsel %vm353, %v369, %v293
  %v386 = vsel %vm354, %v370, %v300
  %v387 = vsel %vm355, %v371, %v307
  %v388 = vlaneseq
  %v389 = vand.u32 %v388, 127
  %vm390 = vcmp.eq.s32.totalorder %v372, %v389
  %vm391 = vcmp.eq.s32.totalorder %v373, %v389
  %vm392 = vcmp.eq.s32.totalorder %v374, %v389
  %vm393 = vcmp.eq.s32.totalorder %v375, %v389
  %vm394 = vcmp.eq.s32.totalorder %v376, %v389
  %vm395 = vcmp.eq.s32.totalorder %v377, %v389
  %vm396 = vcmp.eq.s32.totalorder %v378, %v389
  %vm397 = vcmp.eq.s32.totalorder %v379, %v389
  %vm398 = vcmp.eq.s32.totalorder %v380, %v389
  %vm399 = vcmp.eq.s32.totalorder %v381, %v389
  %vm400 = vcmp.eq.s32.totalorder %v382, %v389
  %vm401 = vcmp.eq.s32.totalorder %v383, %v389
  %vm402 = vcmp.eq.s32.totalorder %v384, %v389
  %vm403 = vcmp.eq.s32.totalorder %v385, %v389
  %vm404 = vcmp.eq.s32.totalorder %v386, %v389
  %vm405 = vcmp.eq.s32.totalorder %v387, %v389
  %v406 = vsel %vm390, 1, 0
  %v407 = vsel %vm391, 1, 0
  %v408 = vsel %vm392, 1, 0
  %v409 = vsel %vm393, 1, 0
  %v410 = vsel %vm394, 1, 0
  %v411 = vsel %vm395, 1, 0
  %v412 = vsel %vm396, 1, 0
  %v413 = vsel %vm397, 1, 0
  %v414 = vsel %vm398, 1, 0
  %v415 = vsel %vm399, 1, 0
  %v416 = vsel %vm400, 1, 0
  %v417 = vsel %vm401, 1, 0
  %v418 = vsel %vm402, 1, 0
  %v419 = vsel %vm403, 1, 0
  %v420 = vsel %vm404, 1, 0
  %v421 = vsel %vm405, 1, 0
  %v422 = vcvt.s32.f32 %v406
  %v423 = vcvt.s32.f32 %v407
  %v424 = vcvt.s32.f32 %v408
  %v425 = vcvt.s32.f32 %v409
  %v426 = vcvt.s32.f32 %v410
  %v427 = vcvt.s32.f32 %v411
  %v428 = vcvt.s32.f32 %v412
  %v429 = vcvt.s32.f32 %v413
  %v430 = vcvt.s32.f32 %v414
  %v431 = vcvt.s32.f32 %v415
  %v432 = vcvt.s32.f32 %v416
  %v433 = vcvt.s32.f32 %v417
  %v434 = vcvt.s32.f32 %v418
  %v435 = vcvt.s32.f32 %v419
  %v436 = vcvt.s32.f32 %v420
  %v437 = vcvt.s32.f32 %v421
  %vm438 = vcmp.lt.s32.totalorder %v389, 0
  %v439 = vsub.s32 0, %v389
  %v440 = vsel %vm438, %v439, %v389
  %v441 = vshrl.u32 %v440, 3
  %v442 = vand.u32 %v440, 7
  %v443 = vsub.s32 0, %v442
  %v444 = vsel %vm438, %v443, %v442
  %vm445 = vcmp.ne.s32.totalorder %v444, 0
  %vm446 = vcmp.lt.s32.totalorder %v444, 0
  %vm447 = vmand %vm446, %vm445
  %v448 = vadd.s32 %v444, 8
  %v449 = vsel %vm447, %v448, %v444
  %vm450 = vcmp.eq.s32.totalorder %v449, %v180
  %v451 = vsel %vm450, 1, 0
  %v452 = vcvt.s32.f32 %v451
  %453 = vmatprep.subr.mxu0 0.0
  %454 = vmatpush1.msra.mxu0 %v422
  %455 = vmatprep.subr.mxu0 0.0
  %456 = vmatpush1.msra.mxu0 %v423
  %457 = vmatprep.subr.mxu0 0.0
  %458 = vmatpush1.msra.mxu0 %v424
  %459 = vmatprep.subr.mxu0 0.0
  %460 = vmatpush1.msra.mxu0 %v425
  %461 = vmatprep.subr.mxu0 0.0
  %462 = vmatpush1.msra.mxu0 %v426
  %463 = vmatprep.subr.mxu0 0.0
  %464 = vmatpush1.msra.mxu0 %v427
  %465 = vmatprep.subr.mxu0 0.0
  %466 = vmatpush1.msra.mxu0 %v428
  %467 = vmatprep.subr.mxu0 0.0
  %468 = vmatpush1.msra.mxu0 %v429
  %469 = vmatprep.subr.mxu0 0.0
  %470 = vmatpush1.msra.mxu0 %v430
  %471 = vmatprep.subr.mxu0 0.0
  %472 = vmatpush1.msra.mxu0 %v431
  %473 = vmatprep.subr.mxu0 0.0
  %474 = vmatpush1.msra.mxu0 %v432
  %475 = vmatprep.subr.mxu0 0.0
  %476 = vmatpush1.msra.mxu0 %v433
  %477 = vmatprep.subr.mxu0 0.0
  %478 = vmatpush1.msra.mxu0 %v434
  %479 = vmatprep.subr.mxu0 0.0
  %480 = vmatpush1.msra.mxu0 %v435
  %481 = vmatprep.subr.mxu0 0.0
  %482 = vmatpush1.msra.mxu0 %v436
  %483 = vmatprep.subr.mxu0 0.0
  %484 = vmatpush1.msra.mxu0 %v437
  %485 = vmatprep.subr.mxu0 0.0
  %486 = vmatpush1.msra.mxu0 0.0
  %487 = vmatprep.subr.mxu0 0.0
  %488 = vmatpush1.msra.mxu0 0.0
  %489 = vmatprep.subr.mxu0 0.0
  %490 = vmatpush1.msra.mxu0 0.0
  %491 = vmatprep.subr.mxu0 0.0
  %492 = vmatpush1.msra.mxu0 0.0
  %493 = vmatprep.subr.mxu0 0.0
  %494 = vmatpush1.msra.mxu0 0.0
  %495 = vmatprep.subr.mxu0 0.0
  %496 = vmatpush1.msra.mxu0 0.0
  %497 = vmatprep.subr.mxu0 0.0
  %498 = vmatpush1.msra.mxu0 0.0
  %499 = vmatprep.subr.mxu0 0.0
  %500 = vmatpush1.msra.mxu0 0.0
  %501 = vmatprep.subr.mxu0 0.0
  %502 = vmatpush1.msra.mxu0 0.0
  %503 = vmatprep.subr.mxu0 0.0
  %504 = vmatpush1.msra.mxu0 0.0
  %505 = vmatprep.subr.mxu0 0.0
  %506 = vmatpush1.msra.mxu0 0.0
  %507 = vmatprep.subr.mxu0 0.0
  %508 = vmatpush1.msra.mxu0 0.0
  %509 = vmatprep.subr.mxu0 0.0
  %510 = vmatpush1.msra.mxu0 0.0
  %511 = vmatprep.subr.mxu0 0.0
  %512 = vmatpush1.msra.mxu0 0.0
  %513 = vmatprep.subr.mxu0 0.0
  %514 = vmatpush1.msra.mxu0 0.0
  %515 = vmatprep.subr.mxu0 0.0
  %516 = vmatpush1.msra.mxu0 0.0
  %517 = vmatprep.mubr.f32.mxu0 0.0
  %518 = vmatmul.mubr.f32.gmra.mrb[0].mxu0 %v178
  %v519 = vpop.f32.mrb[0].mxu0
  %v520 = vadd.f32 0.0, %v519
  %v521 = vpop.f32.mrb[0].mxu0
  %522 = vdwg.mxu0
  %v523 = vmul.f32 %v520, 0.001953125
  %v524 = vmul.f32 %v523, %v523
  %v526 = vrot.slane %v524, 7
  %v528 = vsub.f32 %v523, %v526
  %v529 = vld [vmem:[%s2] sm:$0x3]
  %v530 = vadd.f32 %v528, 1e-05
  %v531 = vrsqrt.pop %v530
  %v533 = vrot.slane %v531, 1
  %v535 = vmul.f32 %v529, %v533
  %v536 = vmul.f32 %v523, %v535
  %v538 = vrot.slane %v536, 7
  %v540 = vsub.f32 %v529, %v538
  %v541 = vsel %vm177, %v535, %v540
  %vm542 = vcmask 64512
  %v544 = vsel %vm542, %v541, 0
  %546 = vmatprep.subr.mxu0 0.0
  %547 = vmatpush1.msra.mxu0 %v452
  %548 = vmatprep.subr.mxu0 0.0
  %549 = vmatpush1.msra.mxu0 0.0
  %550 = vmatprep.subr.mxu0 0.0
  %551 = vmatpush1.msra.mxu0 0.0
  %552 = vmatprep.subr.mxu0 0.0
  %553 = vmatpush1.msra.mxu0 0.0
  %554 = vmatprep.subr.mxu0 0.0
  %555 = vmatpush1.msra.mxu0 0.0
  %556 = vmatprep.subr.mxu0 0.0
  %557 = vmatpush1.msra.mxu0 0.0
  %558 = vmatprep.subr.mxu0 0.0
  %559 = vmatpush1.msra.mxu0 0.0
  %560 = vmatprep.subr.mxu0 0.0
  %561 = vmatpush1.msra.mxu0 0.0
  %562 = vmatprep.subr.mxu0 0.0
  %563 = vmatpush1.msra.mxu0 0.0
  %564 = vmatprep.subr.mxu0 0.0
  %565 = vmatpush1.msra.mxu0 0.0
  %566 = vmatprep.subr.mxu0 0.0
  %567 = vmatpush1.msra.mxu0 0.0
  %568 = vmatprep.subr.mxu0 0.0
  %569 = vmatpush1.msra.mxu0 0.0
  %570 = vmatprep.subr.mxu0 0.0
  %571 = vmatpush1.msra.mxu0 0.0
  %572 = vmatprep.subr.mxu0 0.0
  %573 = vmatpush1.msra.mxu0 0.0
  %574 = vmatprep.subr.mxu0 0.0
  %575 = vmatpush1.msra.mxu0 0.0
  %576 = vmatprep.subr.mxu0 0.0
  %577 = vmatpush1.msra.mxu0 0.0
  %578 = vmatprep.subr.mxu0 0.0
  %579 = vmatpush1.msra.mxu0 0.0
  %580 = vmatprep.subr.mxu0 0.0
  %581 = vmatpush1.msra.mxu0 0.0
  %582 = vmatprep.subr.mxu0 0.0
  %583 = vmatpush1.msra.mxu0 0.0
  %584 = vmatprep.subr.mxu0 0.0
  %585 = vmatpush1.msra.mxu0 0.0
  %586 = vmatprep.subr.mxu0 0.0
  %587 = vmatpush1.msra.mxu0 0.0
  %588 = vmatprep.subr.mxu0 0.0
  %589 = vmatpush1.msra.mxu0 0.0
  %590 = vmatprep.subr.mxu0 0.0
  %591 = vmatpush1.msra.mxu0 0.0
  %592 = vmatprep.subr.mxu0 0.0
  %593 = vmatpush1.msra.mxu0 0.0
  %594 = vmatprep.subr.mxu0 0.0
  %595 = vmatpush1.msra.mxu0 0.0
  %596 = vmatprep.subr.mxu0 0.0
  %597 = vmatpush1.msra.mxu0 0.0
  %598 = vmatprep.subr.mxu0 0.0
  %599 = vmatpush1.msra.mxu0 0.0
  %600 = vmatprep.subr.mxu0 0.0
  %601 = vmatpush1.msra.mxu0 0.0
  %602 = vmatprep.subr.mxu0 0.0
  %603 = vmatpush1.msra.mxu0 0.0
  %604 = vmatprep.subr.mxu0 0.0
  %605 = vmatpush1.msra.mxu0 0.0
  %606 = vmatprep.subr.mxu0 0.0
  %607 = vmatpush1.msra.mxu0 0.0
  %608 = vmatprep.subr.mxu0 0.0
  %609 = vmatpush1.msra.mxu0 0.0
  %610 = vmatprep.mubr.f32.mxu0 0.0
  %611 = vmatmul.mubr.f32.gmra.mrb[0].mxu0 %v544
  %v612 = vpop.f32.mrb[0].mxu0
  %v613 = vadd.f32 0.0, %v612
  %v614 = vpop.f32.mrb[0].mxu0
  %615 = vdwg.mxu0
  %v616 = vlaneseq
  %v617 = vshrl.u32 %v616, 7
  %v618 = vsub.s32 0, %v617
  %v619 = vrot.slane %v613, %v618
  %v620 = vmul.f32 %v151, %v619
  %v621 = vmul.f32 %v152, %v619
  %v622 = vmul.f32 %v153, %v619
  %v623 = vmul.f32 %v154, %v619
  %v624 = vlaneseq
  %v625 = vshrl.u32 %v624, 7
  %v626 = vsub.s32 1, %v625
  %v627 = vrot.slane %v613, %v626
  %v628 = vadd.f32 %v620, %v627
  %v629 = vadd.f32 %v621, %v627
  %v630 = vadd.f32 %v622, %v627
  %v631 = vadd.f32 %v623, %v627
  %v632 = vmax.f32 %v628, 0.0
  %v633 = vmax.f32 %v629, 0.0
  %v634 = vmax.f32 %v630, 0.0
  %v635 = vmax.f32 %v631, 0.0
  %636 = vst [vmem:[%s3] sm:$0xff] %v632
  %637 = vst [vmem:[%s3 + $0x8] sm:$0xff] %v633
  %638 = vst [vmem:[%s3 + $0x10] sm:$0xff] %v634
  %639 = vst [vmem:[%s3 + $0x18] sm:$0xff] %v635
  // Predicated region
  $region14: #{conv_bn_relu.1} parent=0 // pred_check
    _
  $region15: #{conv_bn_relu.1} parent=0 // pred_check_branch
    %641 = sbr.rel (0) target = $region17
  $region16: #{conv_bn_relu.1} parent=0 // pred_region
    _
  $region17: #{conv_bn_relu.1} parent=0 // pred_fallthru
    _
  // Predicated region
  $region18: #{conv_bn_relu.1} parent=0 // pred_check
    _
  $region19: #{conv_bn_relu.1} parent=0 // pred_check_branch
    %643 = sbr.rel (0) target = $region21
  $region20: #{conv_bn_relu.1} parent=0 // pred_region
    _
  $region21: #{conv_bn_relu.1} parent=0 // pred_fallthru
    _

</llo_original>
